<compile_context>
chip_gen: v7x
topology: tpu7x:2x2x1
jax: 0.10.0
libtpu: 0.0.40
codegen_flags: <defaults>
</compile_context>

<pallas_src>
import jax
import jax.numpy as jnp
from jax.experimental import pallas as pl
from jax.experimental.pallas import tpu as pltpu

TINY = 1e-13   # tiny_value_of_dtype(torch.float)
LANE = 128     # TPU lane width
SUB = 8        # TPU sublane width


def _round_up(n, mult):
    return ((n + mult - 1) // mult) * mult


def _acd_fused_kernel(x_ref, mask_ref, wcat_ref, wbcat_ref, uwbd_ref,
                      pwt_ref, pb_ref, y_ref):
    """One grid step = one batch tile; logits for ALL aspects.

    x_ref     : (TB, Sp, Hbp)  bpe embeddings (bf16 or f32), Hb zero-padded
    mask_ref  : (TB, Sp, 1)    f32 mask (1.0 valid / 0.0 pad)
    wcat_ref  : (Hbp, A*H)     concatenated AttentionInHtt.W weights
    wbcat_ref : (1, A*H)       concatenated AttentionInHtt.W biases (f32)
    uwbd_ref  : (A*H, A)       block-diagonal AttentionInHtt.uw weights (f32)
    pwt_ref   : (Hbp, A)       stacked predicts[a] weights, transposed
    pb_ref    : (1, A)         stacked predicts[a] biases (f32)
    y_ref     : (TB, 1, A)     output logits (f32)
    """
    x = x_ref[...]
    m = mask_ref[...]
    TB, Sp, Hbp = x.shape
    A = pb_ref.shape[-1]

    x2 = x.reshape(TB * Sp, Hbp)        # leading-dim collapse (Sp % 8 == 0)

    # u = tanh(h @ W + b) for every aspect in one MXU matmul (f32 accumulate).
    u = jnp.tanh(jnp.dot(x2, wcat_ref[...],
                         preferred_element_type=jnp.float32) + wbcat_ref[...])

    # Fused predict projection: xp[b*s, a] = x[b,s,:] @ predicts[a].weight.
    # Shares the resident x tile; replaces the old M=4 batched dot_general
    # + lane-reduce epilogue with one large-M MXU matmul.
    xp = jnp.dot(x2, pwt_ref[...], preferred_element_type=jnp.float32)

    # Similarities: block-diagonal uw matmul, one column per aspect.
    sim = jnp.dot(u, uwbd_ref[...], preferred_element_type=jnp.float32)

    sim = sim.reshape(TB, Sp, A)
    xp = xp.reshape(TB, Sp, A)

    # masked_softmax over the sequence axis (memory_efficient=False), with the
    # algebraically-redundant first normalization removed:
    #   p = exp(sim*m - max) * m / (sum(exp(sim*m - max) * m) + TINY)
    z = sim * m
    z = z - jnp.max(z, axis=1, keepdims=True)
    e = jnp.exp(z) * m
    p = e / (jnp.sum(e, axis=1, keepdims=True) + TINY)

    # y[b, a] = sum_s p[b,s,a] * xp[b,s,a] + pb[a]
    y_ref[...] = jnp.sum(p * xp, axis=1, keepdims=True) + pb_ref[...]


def prepare_acd_params(W, Wb, UW, PW, PB, *, matmul_dtype=jnp.bfloat16):
    """Fuses / pads the per-aspect weights once (hoisted out of the call path).

    W  : (A, Hb, H)  AttentionInHtt.W weight      Wb : (A, H) its bias
    UW : (A, H)      AttentionInHtt.uw weight
    PW : (A, Hb)     predicts[a] weight           PB : (A,)   its bias
    """
    A, Hb, H = W.shape
    Hbp = _round_up(Hb, LANE)
    if Hbp != Hb:
        W = jnp.pad(W, ((0, 0), (0, Hbp - Hb), (0, 0)))
        PW = jnp.pad(PW, ((0, 0), (0, Hbp - Hb)))
    # W_cat[h, a*H + k] = W[a, h, k] -> one MXU matmul yields u for all aspects.
    W_cat = jnp.transpose(W, (1, 0, 2)).reshape(Hbp, A * H).astype(matmul_dtype)
    Wb_cat = Wb.reshape(1, A * H).astype(jnp.float32)
    # Block-diagonal uw so sim for every aspect is one (A*H, A) matmul.
    UW_bd = (UW.astype(jnp.float32)[:, :, None]
             * jnp.eye(A, dtype=jnp.float32)[:, None, :]).reshape(A * H, A)
    PW_T = jnp.transpose(PW).astype(matmul_dtype)      # (Hbp, A)
    PB_row = PB.reshape(1, A).astype(jnp.float32)
    return {"W_cat": W_cat, "Wb_cat": Wb_cat, "UW_bd": UW_bd,
            "PW_T": PW_T, "PB_row": PB_row}


def _auto_batch_tile(B, Sp, Hbp, itemsize, per_buffer_bytes=4 << 20):
    # Keep each x tile around a few MiB so double-buffering + weights +
    # intermediates stay well inside the scoped-VMEM budget on all chips.
    rows = max(1, per_buffer_bytes // (Sp * Hbp * itemsize))
    return int(min(B, rows))


def acd_bert_head(bpe_embedding, mask, params, *, batch_tile=None,
                  vmem_limit_bytes=32 * 1024 * 1024):
    """Runs all per-aspect attention heads + predict layers in one pallas_call.

    bpe_embedding : (B, S, Hb) f32    mask : (B, S) f32 (1.0 / 0.0)
    params        : output of prepare_acd_params
    returns logits y of shape (B, A)  (matches torch .permute(1, 0)).
    """
    B, S, Hb = bpe_embedding.shape
    W_cat = params["W_cat"]
    Hbp, AH = W_cat.shape
    A = params["PB_row"].shape[-1]
    matmul_dtype = W_cat.dtype

    Sp = _round_up(S, SUB)

    x = bpe_embedding
    if (Sp != S) or (Hbp != Hb):          # skipped when already lane/sublane aligned
        x = jnp.pad(x, ((0, 0), (0, Sp - S), (0, Hbp - Hb)))
    x = x.astype(matmul_dtype)            # bf16 halves the streamed HBM traffic
    m = mask
    if Sp != S:
        m = jnp.pad(m, ((0, 0), (0, Sp - S)))
    m = m.astype(jnp.float32)[:, :, None]  # (B, Sp, 1)

    if batch_tile is None:
        batch_tile = _auto_batch_tile(B, Sp, Hbp, jnp.dtype(matmul_dtype).itemsize)
    TB = int(max(1, min(batch_tile, B)))
    num_tiles = pl.cdiv(B, TB)
    Bp = num_tiles * TB
    if Bp != B:                            # pad rows are fully masked -> logits = pb, sliced off
        x = jnp.pad(x, ((0, Bp - B), (0, 0), (0, 0)))
        m = jnp.pad(m, ((0, Bp - B), (0, 0), (0, 0)))

    y = pl.pallas_call(
        _acd_fused_kernel,
        out_shape=jax.ShapeDtypeStruct((Bp, 1, A), jnp.float32),
        grid_spec=pltpu.PrefetchScalarGridSpec(
            num_scalar_prefetch=0,
            grid=(num_tiles,),
            in_specs=[
                pl.BlockSpec((TB, Sp, Hbp), lambda i: (i, 0, 0)),  # x (streamed)
                pl.BlockSpec((TB, Sp, 1), lambda i: (i, 0, 0)),    # mask (streamed)
                pl.BlockSpec((Hbp, AH), lambda i: (0, 0)),         # fused W (resident)
                pl.BlockSpec((1, AH), lambda i: (0, 0)),           # fused W bias
                pl.BlockSpec((AH, A), lambda i: (0, 0)),           # block-diag uw
                pl.BlockSpec((Hbp, A), lambda i: (0, 0)),          # predict w^T
                pl.BlockSpec((1, A), lambda i: (0, 0)),            # predict b
            ],
            out_specs=pl.BlockSpec((TB, 1, A), lambda i: (i, 0, 0)),
        ),
        compiler_params=pltpu.CompilerParams(
            dimension_semantics=("parallel",),
            vmem_limit_bytes=vmem_limit_bytes),
    )(x, m, params["W_cat"], params["Wb_cat"], params["UW_bd"],
      params["PW_T"], params["PB_row"])

    return y[:B, 0, :]                     # (B, A)


def bce_with_logits(logits, targets):
    # torch.nn.BCEWithLogitsLoss (mean reduction)
    per_elem = jnp.logaddexp(0.0, logits) - logits * targets
    return jnp.mean(per_elem)


def _reference(bpe_embedding, mask, W, Wb, UW, PW, PB,
               matmul_dtype=jnp.float32):
    """Pure-JAX reference mirroring the PyTorch forward (for verification).

    matmul_dtype controls the rounding of the MXU matmul operands so the
    bf16 kernel can be checked against an identically-quantized reference.
    """
    f32 = jnp.float32
    x_q = bpe_embedding.astype(matmul_dtype)
    W_q = W.astype(matmul_dtype)
    PW_q = PW.astype(matmul_dtype)
    u = jnp.tanh(jnp.einsum('bsh,ahk->absk', x_q, W_q,
                            preferred_element_type=f32)
                 + Wb[:, None, None, :])                         # (A, B, S, H)
    sim = jnp.einsum('absk,ak->abs', u, UW,
                     preferred_element_type=f32)                 # (A, B, S)
    z = sim * mask[None]
    z = z - jnp.max(z, axis=-1, keepdims=True)
    e = jnp.exp(z)
    p = e / jnp.sum(e, axis=-1, keepdims=True)
    p = p * mask[None]
    p = p / (jnp.sum(p, axis=-1, keepdims=True) + TINY)
    r = jnp.einsum('abs,bsh->abh', p, x_q.astype(f32),
                   preferred_element_type=f32)                   # (A, B, Hb)
    y = jnp.einsum('abh,ah->ab', r, PW_q.astype(f32),
                   preferred_element_type=f32) + PB[:, None]     # (A, B)
    return y.T                                                   # (B, A)


if __name__ == "__main__":
    # Small shapes consistent with the forward pass.
    B, S = 2, 8            # batch, (word-level) sequence length
    Hb, H = 32, 32         # opt.hidden_size_bert, opt.hidden_size
    A = 4                  # number of aspects

    key = jax.random.PRNGKey(0)
    k_emb, k_w, k_wb, k_uw, k_pw, k_pb, k_asp = jax.random.split(key, 7)

    # TODO(synk): pretrained BERT encoder, BPE tokenizer and the word->BPE
    # dict remapping have no Pallas equivalent; synthetic embeddings/mask
    # stand in for them.
    bpe_embedding = jax.random.normal(k_emb, (B, S, Hb), dtype=jnp.float32)
    lengths = jnp.array([S, S - 3], dtype=jnp.int32)            # 2nd sent padded
    mask = (jnp.arange(S)[None, :] < lengths[:, None]).astype(jnp.float32)
    bpe_embedding = bpe_embedding * mask[:, :, None]            # zero pad positions

    # Deterministic parameter init (shapes from AttentionInHtt / nn.Linear).
    W = jax.random.normal(k_w, (A, Hb, H), dtype=jnp.float32) * 0.1
    Wb = jax.random.normal(k_wb, (A, H), dtype=jnp.float32) * 0.1
    UW = jax.random.normal(k_uw, (A, H), dtype=jnp.float32) * 0.1
    PW = jax.random.normal(k_pw, (A, Hb), dtype=jnp.float32) * 0.1
    PB = jax.random.normal(k_pb, (A,), dtype=jnp.float32) * 0.1

    # Weight fusion hoisted out of the per-call path (bf16 = recommended path).
    params_bf16 = prepare_acd_params(W, Wb, UW, PW, PB, matmul_dtype=jnp.bfloat16)
    params_f32 = prepare_acd_params(W, Wb, UW, PW, PB, matmul_dtype=jnp.float32)

    # batch_tile=1 -> grid=(2,): exercises the streamed / pipelined batch axis.
    y = jax.block_until_ready(
        acd_bert_head(bpe_embedding, mask, params_bf16, batch_tile=1))
    y_f32 = jax.block_until_ready(
        acd_bert_head(bpe_embedding, mask, params_f32, batch_tile=1))

    # One-hot aspect targets + BCEWithLogits loss (glue, as in the module).
    aspect_idx = jax.random.randint(k_asp, (B,), 0, A)
    targets = jax.nn.one_hot(aspect_idx, A, dtype=jnp.float32)
    loss = jax.block_until_ready(bce_with_logits(y, targets))

    # Verification against pure-JAX references.
    ref_f32 = _reference(bpe_embedding, mask, W, Wb, UW, PW, PB,
                         matmul_dtype=jnp.float32)
    ref_bf16 = _reference(bpe_embedding, mask, W, Wb, UW, PW, PB,
                          matmul_dtype=jnp.bfloat16)

    assert y.shape == (B, A) and bool(jnp.isfinite(loss))
    # bf16 kernel vs identically-quantized reference: only accumulation-order
    # level differences remain.
    assert jnp.allclose(y, ref_bf16, atol=1e-2, rtol=1e-2), (y, ref_bf16)
    # bf16 kernel vs full-f32 reference: bounded by bf16 quantization error.
    assert jnp.allclose(y, ref_f32, atol=6e-2, rtol=6e-2), (y, ref_f32)
    # f32 kernel vs f32 reference (tolerance allows for the TPU MXU's default
    # bf16-pass precision on f32 matmuls differing between lowerings).
    assert jnp.allclose(y_f32, ref_f32, atol=1e-2, rtol=1e-2), (y_f32, ref_f32)

    print("KERNEL_OK")
</pallas_src>

<mosaic_0001>
module attributes {stable_mosaic.version = 11 : i64} {
  func.func @_acd_fused_kernel(%arg0: i32, %arg1: memref<1x8x128xbf16, #tpu.memory_space<vmem>>, %arg2: memref<1x8x1xf32, #tpu.memory_space<vmem>>, %arg3: memref<128x128xbf16, #tpu.memory_space<vmem>>, %arg4: memref<1x128xf32, #tpu.memory_space<vmem>>, %arg5: memref<128x4xf32, #tpu.memory_space<vmem>>, %arg6: memref<128x4xbf16, #tpu.memory_space<vmem>>, %arg7: memref<1x4xf32, #tpu.memory_space<vmem>>, %arg8: memref<1x1x4xf32, #tpu.memory_space<vmem>>) attributes {dimension_semantics = [#tpu.dimension_semantics<parallel>], iteration_bounds = array<i64: 2>, scalar_prefetch = 0 : i64, scratch_operands = 0 : i64, tpu.core_type = #tpu.core_type<tc>, window_params = [{transform_indices = @transform_0, window_bounds = array<i64: 1, 8, 128>}, {transform_indices = @transform_1, window_bounds = array<i64: 1, 8, 1>}, {pipeline_mode = #tpu.pipeline_mode<synchronous>, transform_indices = @transform_2, window_bounds = array<i64: 128, 128>}, {pipeline_mode = #tpu.pipeline_mode<synchronous>, transform_indices = @transform_3, window_bounds = array<i64: 1, 128>}, {pipeline_mode = #tpu.pipeline_mode<synchronous>, transform_indices = @transform_4, window_bounds = array<i64: 128, 4>}, {pipeline_mode = #tpu.pipeline_mode<synchronous>, transform_indices = @transform_5, window_bounds = array<i64: 128, 4>}, {pipeline_mode = #tpu.pipeline_mode<synchronous>, transform_indices = @transform_6, window_bounds = array<i64: 1, 4>}, {transform_indices = @transform_7, window_bounds = array<i64: 1, 1, 4>}]} {
    %c0 = arith.constant 0 : index
    %c0_0 = arith.constant 0 : index
    %c0_1 = arith.constant 0 : index
    %0 = vector.load %arg1[%c0, %c0_0, %c0_1] : memref<1x8x128xbf16, #tpu.memory_space<vmem>>, vector<1x8x128xbf16>
    %c0_2 = arith.constant 0 : index
    %c0_3 = arith.constant 0 : index
    %c0_4 = arith.constant 0 : index
    %1 = vector.load %arg2[%c0_2, %c0_3, %c0_4] : memref<1x8x1xf32, #tpu.memory_space<vmem>>, vector<1x8x1xf32>
    %2 = vector.shape_cast %0 : vector<1x8x128xbf16> to vector<8x128xbf16>
    %c0_5 = arith.constant 0 : index
    %c0_6 = arith.constant 0 : index
    %3 = vector.load %arg3[%c0_5, %c0_6] : memref<128x128xbf16, #tpu.memory_space<vmem>>, vector<128x128xbf16>
    %cst = arith.constant dense<0.000000e+00> : vector<8x128xf32>
    %4 = tpu.matmul %2, %3, %cst {dimension_numbers = #tpu.dot_dimension_numbers<[1], [0], [0], [1], [0, 0, 1, 1], [], []>} : vector<8x128xbf16>, vector<128x128xbf16>, vector<8x128xf32> -> vector<8x128xf32>
    %c0_7 = arith.constant 0 : index
    %c0_8 = arith.constant 0 : index
    %5 = vector.load %arg4[%c0_7, %c0_8] : memref<1x128xf32, #tpu.memory_space<vmem>>, vector<1x128xf32>
    %6 = vector.broadcast %5 : vector<1x128xf32> to vector<8x128xf32>
    %7 = arith.addf %4, %6 : vector<8x128xf32>
    %8 = math.tanh %7 : vector<8x128xf32>
    %c0_9 = arith.constant 0 : index
    %c0_10 = arith.constant 0 : index
    %9 = vector.load %arg6[%c0_9, %c0_10] : memref<128x4xbf16, #tpu.memory_space<vmem>>, vector<128x4xbf16>
    %cst_11 = arith.constant dense<0.000000e+00> : vector<8x4xf32>
    %10 = tpu.matmul %2, %9, %cst_11 {dimension_numbers = #tpu.dot_dimension_numbers<[1], [0], [0], [1], [0, 0, 1, 1], [], []>} : vector<8x128xbf16>, vector<128x4xbf16>, vector<8x4xf32> -> vector<8x4xf32>
    %c0_12 = arith.constant 0 : index
    %c0_13 = arith.constant 0 : index
    %11 = vector.load %arg5[%c0_12, %c0_13] : memref<128x4xf32, #tpu.memory_space<vmem>>, vector<128x4xf32>
    %cst_14 = arith.constant dense<0.000000e+00> : vector<8x4xf32>
    %12 = tpu.matmul %8, %11, %cst_14 {dimension_numbers = #tpu.dot_dimension_numbers<[1], [0], [0], [1], [0, 0, 1, 1], [], []>} : vector<8x128xf32>, vector<128x4xf32>, vector<8x4xf32> -> vector<8x4xf32>
    %13 = vector.shape_cast %12 : vector<8x4xf32> to vector<1x8x4xf32>
    %14 = vector.shape_cast %10 : vector<8x4xf32> to vector<1x8x4xf32>
    %15 = vector.broadcast %1 : vector<1x8x1xf32> to vector<1x8x4xf32>
    %16 = arith.mulf %13, %15 : vector<1x8x4xf32>
    %cst_15 = arith.constant dense<0xFF800000> : vector<1x4xf32>
    %17 = vector.multi_reduction <maximumf>, %16, %cst_15 [1] : vector<1x8x4xf32> to vector<1x4xf32>
    %18 = vector.shape_cast %17 : vector<1x4xf32> to vector<1x1x4xf32>
    %19 = vector.broadcast %18 : vector<1x1x4xf32> to vector<1x8x4xf32>
    %20 = arith.subf %16, %19 : vector<1x8x4xf32>
    %21 = math.exp %20 : vector<1x8x4xf32>
    %22 = vector.broadcast %1 : vector<1x8x1xf32> to vector<1x8x4xf32>
    %23 = arith.mulf %21, %22 : vector<1x8x4xf32>
    %cst_16 = arith.constant dense<0.000000e+00> : vector<1x4xf32>
    %24 = vector.multi_reduction <add>, %23, %cst_16 [1] : vector<1x8x4xf32> to vector<1x4xf32>
    %25 = vector.shape_cast %24 : vector<1x4xf32> to vector<1x1x4xf32>
    %cst_17 = arith.constant 9.99999982E-14 : f32
    %26 = vector.broadcast %cst_17 : f32 to vector<1x1x4xf32>
    %27 = arith.addf %25, %26 : vector<1x1x4xf32>
    %28 = vector.broadcast %27 : vector<1x1x4xf32> to vector<1x8x4xf32>
    %29 = arith.divf %23, %28 : vector<1x8x4xf32>
    %30 = arith.mulf %29, %14 : vector<1x8x4xf32>
    %cst_18 = arith.constant dense<0.000000e+00> : vector<1x4xf32>
    %31 = vector.multi_reduction <add>, %30, %cst_18 [1] : vector<1x8x4xf32> to vector<1x4xf32>
    %32 = vector.shape_cast %31 : vector<1x4xf32> to vector<1x1x4xf32>
    %c0_19 = arith.constant 0 : index
    %c0_20 = arith.constant 0 : index
    %33 = vector.load %arg7[%c0_19, %c0_20] : memref<1x4xf32, #tpu.memory_space<vmem>>, vector<1x4xf32>
    %34 = vector.shape_cast %33 : vector<1x4xf32> to vector<1x1x4xf32>
    %35 = arith.addf %32, %34 : vector<1x1x4xf32>
    %c0_21 = arith.constant 0 : index
    %c0_22 = arith.constant 0 : index
    %c0_23 = arith.constant 0 : index
    %36 = vector.load %arg8[%c0_21, %c0_22, %c0_23] : memref<1x1x4xf32, #tpu.memory_space<vmem>>, vector<1x1x4xf32>
    tpu.vector_store %arg8[%c0_21, %c0_22, %c0_23], %35 {strides = array<i32>} : memref<1x1x4xf32, #tpu.memory_space<vmem>>, vector<1x1x4xf32>,
    return
  }
  func.func @transform_0(%arg0: i32) -> (i32, i32, i32) {
    %c0_i32 = arith.constant 0 : i32
    %c0_i32_0 = arith.constant 0 : i32
    %c0_i32_1 = arith.constant 0 : i32
    return %arg0, %c0_i32, %c0_i32_0 : i32, i32, i32
  }
  func.func @transform_1(%arg0: i32) -> (i32, i32, i32) {
    %c0_i32 = arith.constant 0 : i32
    %c0_i32_0 = arith.constant 0 : i32
    %c0_i32_1 = arith.constant 0 : i32
    return %arg0, %c0_i32, %c0_i32_0 : i32, i32, i32
  }
  func.func @transform_2(%arg0: i32) -> (i32, i32) {
    %c0_i32 = arith.constant 0 : i32
    %c0_i32_0 = arith.constant 0 : i32
    %c0_i32_1 = arith.constant 0 : i32
    return %c0_i32, %c0_i32_0 : i32, i32
  }
  func.func @transform_3(%arg0: i32) -> (i32, i32) {
    %c0_i32 = arith.constant 0 : i32
    %c0_i32_0 = arith.constant 0 : i32
    %c0_i32_1 = arith.constant 0 : i32
    return %c0_i32, %c0_i32_0 : i32, i32
  }
  func.func @transform_4(%arg0: i32) -> (i32, i32) {
    %c0_i32 = arith.constant 0 : i32
    %c0_i32_0 = arith.constant 0 : i32
    %c0_i32_1 = arith.constant 0 : i32
    return %c0_i32, %c0_i32_0 : i32, i32
  }
  func.func @transform_5(%arg0: i32) -> (i32, i32) {
    %c0_i32 = arith.constant 0 : i32
    %c0_i32_0 = arith.constant 0 : i32
    %c0_i32_1 = arith.constant 0 : i32
    return %c0_i32, %c0_i32_0 : i32, i32
  }
  func.func @transform_6(%arg0: i32) -> (i32, i32) {
    %c0_i32 = arith.constant 0 : i32
    %c0_i32_0 = arith.constant 0 : i32
    %c0_i32_1 = arith.constant 0 : i32
    return %c0_i32, %c0_i32_0 : i32, i32
  }
  func.func @transform_7(%arg0: i32) -> (i32, i32, i32) {
    %c0_i32 = arith.constant 0 : i32
    %c0_i32_0 = arith.constant 0 : i32
    %c0_i32_1 = arith.constant 0 : i32
    return %arg0, %c0_i32, %c0_i32_0 : i32, i32, i32
  }
}

</mosaic_0001>

<llo_original>
// kernel: tpu_custom_call.1
$region0: #{tpu_custom_call.1}
  #allocation0 [shape = 'u32[]', space=smem, size = 0x4, offset = 0x4, fixed_abs, tag = 'smem constant byte address 0x4 - core index']
  #allocation1 [shape = 'u32[144,128]{1,0:T(1,128)}', space=vmem, size = 0x12000, scoped, tag = 'internal scratch']
  %s0 = inlined_call_operand.vmem [shape: bf16[2,8,128], index: 0, kind: input, shape index: {}]
  %s1 = inlined_call_operand.vmem [shape: f32[2,8,1], index: 1, kind: input, shape index: {}]
  %s2 = inlined_call_operand.vmem [shape: bf16[128,128], index: 2, kind: input, shape index: {}]
  %s3 = inlined_call_operand.vmem [shape: f32[1,128], index: 3, kind: input, shape index: {}]
  %s4 = inlined_call_operand.vmem [shape: f32[128,4], index: 4, kind: input, shape index: {}]
  %s5 = inlined_call_operand.vmem [shape: bf16[128,4], index: 5, kind: input, shape index: {}]
  %s6 = inlined_call_operand.vmem [shape: f32[1,4], index: 6, kind: input, shape index: {}]
  %s7 = inlined_call_operand.hbm [shape: f32[2,1,4], index: 7, kind: output, shape index: {}]
  %s8 = sld [smem:[#allocation0]]
  $region61: #{tpu_custom_call.1} parent=0
    _
  %s10 = ssub.s32 1, %s8
  %s11 = scalar_select 0, %s10, %s8
  $region1: #{tpu_custom_call.1} parent=0
    #allocation2 [shape = 'u8[1024]{0}', space=vmem, size = 0x400, scoped, tag = 'output window, operand 0']
    #allocation3 [shape = 's32[2]{0}', space=sflag, size = 0x8, scoped, tag = 'scoped memory for tpu_custom_call.1']
    %12 = vsyncpa [#allocation3], 0
    %s13 = scalar_lea.sflag [#allocation3], 1
    %14 = vsyncpa %s13, 0
    loop: start=0, step=1, limit=4
    $region2: #{tpu_custom_call.1} parent=1 // loop_pre_header
      _
    $region3: #{tpu_custom_call.1} parent=1 // loop_header
      %s16 = sphi 0, %s20
      %p17 = scmp.ge.s32.totalorder %s16, 4
      %s26 = sphi 0, %s28
      %s29 = sphi 0, %s26
      %s30 = sphi 0, %s29
      %s46 = sphi 0, %s30
      %s52 = sphi 0, %s54
      %s55 = sphi 0, %s52
      %s56 = sphi 0, %s55
      %s72 = sphi 0, %s56
      %s76 = sphi 0, %s76
      %s78 = sphi 0, %s76
      %s79 = sphi 0, %s78
      %s93 = sphi 0, %s79
      %s97 = sphi 0, %s97
      %s99 = sphi 0, %s97
      %s100 = sphi 0, %s99
      %s114 = sphi 0, %s100
      %s118 = sphi 0, %s118
      %s120 = sphi 0, %s118
      %s121 = sphi 0, %s120
      %s135 = sphi 0, %s121
      %s139 = sphi 0, %s139
      %s141 = sphi 0, %s139
      %s142 = sphi 0, %s141
      %s156 = sphi 0, %s142
      %s160 = sphi 0, %s160
      %s162 = sphi 0, %s160
      %s163 = sphi 0, %s162
      %s177 = sphi 0, %s163
      %s183 = sphi 0, %s185
      %s186 = sphi 0, %s183
      %s187 = sphi 0, %s186
      %s203 = sphi 0, %s187
    $region4: #{tpu_custom_call.1} parent=1 // loop_header_branch
      %19 = sbr.rel (%p17) target = $region8
    $region5: #{tpu_custom_call.1} parent=1 // loop_body
      %s21 = ssub.s32 %s16, 1
      %s22 = ssub.s32 %s16, 2
      %s23 = sadd.s32 %s16, 1
      %s24 = ssub.s32 %s16, %s23
      %p25 = scmp.eq.s32.totalorder %s24, 0
      %s27 = sadd.s32 %s26, 1
      %s28 = scalar_select %p25, %s26, %s27
      %p31 = pneg %p25
      %p32 = scmp.eq.s32.totalorder %s16, 1
      %p33 = por %p31, %p32
      %p34 = scmp.ne.s32.totalorder %s26, %s29
      %p35 = scmp.eq.s32.totalorder %s16, 0
      %p36 = por %p34, %p35
      %p37 = scmp.ne.s32.totalorder %s26, %s29
      %p38 = scmp.eq.s32.totalorder %s21, 1
      %p39 = por %p37, %p38
      %p40 = scmp.ne.s32.totalorder %s29, %s30
      %p41 = scmp.eq.s32.totalorder %s21, 0
      %p42 = por %p40, %p41
      %p43 = scmp.ne.s32.totalorder %s29, %s30
      %p44 = scmp.eq.s32.totalorder %s22, 1
      %p45 = por %p43, %p44
      %p47 = scmp.ne.s32.totalorder %s30, %s46
      %p48 = scmp.eq.s32.totalorder %s22, 0
      %p49 = por %p47, %p48
      %s50 = ssub.s32 %s16, %s23
      %p51 = scmp.eq.s32.totalorder %s50, 0
      %s53 = sadd.s32 %s52, 1
      %s54 = scalar_select %p51, %s52, %s53
      %p57 = pneg %p51
      %p58 = scmp.eq.s32.totalorder %s16, 1
      %p59 = por %p57, %p58
      %p60 = scmp.ne.s32.totalorder %s52, %s55
      %p61 = scmp.eq.s32.totalorder %s16, 0
      %p62 = por %p60, %p61
      %p63 = scmp.ne.s32.totalorder %s52, %s55
      %p64 = scmp.eq.s32.totalorder %s21, 1
      %p65 = por %p63, %p64
      %p66 = scmp.ne.s32.totalorder %s55, %s56
      %p67 = scmp.eq.s32.totalorder %s21, 0
      %p68 = por %p66, %p67
      %p69 = scmp.ne.s32.totalorder %s55, %s56
      %p70 = scmp.eq.s32.totalorder %s22, 1
      %p71 = por %p69, %p70
      %p73 = scmp.ne.s32.totalorder %s56, %s72
      %p74 = scmp.eq.s32.totalorder %s22, 0
      %p75 = por %p73, %p74
      %s77 = sadd.s32 %s76, 1
      %p80 = scmp.eq.s32.totalorder %s16, 1
      %p81 = scmp.ne.s32.totalorder %s76, %s78
      %p82 = scmp.eq.s32.totalorder %s16, 0
      %p83 = por %p81, %p82
      %p84 = scmp.ne.s32.totalorder %s76, %s78
      %p85 = scmp.eq.s32.totalorder %s21, 1
      %p86 = por %p84, %p85
      %p87 = scmp.ne.s32.totalorder %s78, %s79
      %p88 = scmp.eq.s32.totalorder %s21, 0
      %p89 = por %p87, %p88
      %p90 = scmp.ne.s32.totalorder %s78, %s79
      %p91 = scmp.eq.s32.totalorder %s22, 1
      %p92 = por %p90, %p91
      %p94 = scmp.ne.s32.totalorder %s79, %s93
      %p95 = scmp.eq.s32.totalorder %s22, 0
      %p96 = por %p94, %p95
      %s98 = sadd.s32 %s97, 1
      %p101 = scmp.eq.s32.totalorder %s16, 1
      %p102 = scmp.ne.s32.totalorder %s97, %s99
      %p103 = scmp.eq.s32.totalorder %s16, 0
      %p104 = por %p102, %p103
      %p105 = scmp.ne.s32.totalorder %s97, %s99
      %p106 = scmp.eq.s32.totalorder %s21, 1
      %p107 = por %p105, %p106
      %p108 = scmp.ne.s32.totalorder %s99, %s100
      %p109 = scmp.eq.s32.totalorder %s21, 0
      %p110 = por %p108, %p109
      %p111 = scmp.ne.s32.totalorder %s99, %s100
      %p112 = scmp.eq.s32.totalorder %s22, 1
      %p113 = por %p111, %p112
      %p115 = scmp.ne.s32.totalorder %s100, %s114
      %p116 = scmp.eq.s32.totalorder %s22, 0
      %p117 = por %p115, %p116
      %s119 = sadd.s32 %s118, 1
      %p122 = scmp.eq.s32.totalorder %s16, 1
      %p123 = scmp.ne.s32.totalorder %s118, %s120
      %p124 = scmp.eq.s32.totalorder %s16, 0
      %p125 = por %p123, %p124
      %p126 = scmp.ne.s32.totalorder %s118, %s120
      %p127 = scmp.eq.s32.totalorder %s21, 1
      %p128 = por %p126, %p127
      %p129 = scmp.ne.s32.totalorder %s120, %s121
      %p130 = scmp.eq.s32.totalorder %s21, 0
      %p131 = por %p129, %p130
      %p132 = scmp.ne.s32.totalorder %s120, %s121
      %p133 = scmp.eq.s32.totalorder %s22, 1
      %p134 = por %p132, %p133
      %p136 = scmp.ne.s32.totalorder %s121, %s135
      %p137 = scmp.eq.s32.totalorder %s22, 0
      %p138 = por %p136, %p137
      %s140 = sadd.s32 %s139, 1
      %p143 = scmp.eq.s32.totalorder %s16, 1
      %p144 = scmp.ne.s32.totalorder %s139, %s141
      %p145 = scmp.eq.s32.totalorder %s16, 0
      %p146 = por %p144, %p145
      %p147 = scmp.ne.s32.totalorder %s139, %s141
      %p148 = scmp.eq.s32.totalorder %s21, 1
      %p149 = por %p147, %p148
      %p150 = scmp.ne.s32.totalorder %s141, %s142
      %p151 = scmp.eq.s32.totalorder %s21, 0
      %p152 = por %p150, %p151
      %p153 = scmp.ne.s32.totalorder %s141, %s142
      %p154 = scmp.eq.s32.totalorder %s22, 1
      %p155 = por %p153, %p154
      %p157 = scmp.ne.s32.totalorder %s142, %s156
      %p158 = scmp.eq.s32.totalorder %s22, 0
      %p159 = por %p157, %p158
      %s161 = sadd.s32 %s160, 1
      %p164 = scmp.eq.s32.totalorder %s16, 1
      %p165 = scmp.ne.s32.totalorder %s160, %s162
      %p166 = scmp.eq.s32.totalorder %s16, 0
      %p167 = por %p165, %p166
      %p168 = scmp.ne.s32.totalorder %s160, %s162
      %p169 = scmp.eq.s32.totalorder %s21, 1
      %p170 = por %p168, %p169
      %p171 = scmp.ne.s32.totalorder %s162, %s163
      %p172 = scmp.eq.s32.totalorder %s21, 0
      %p173 = por %p171, %p172
      %p174 = scmp.ne.s32.totalorder %s162, %s163
      %p175 = scmp.eq.s32.totalorder %s22, 1
      %p176 = por %p174, %p175
      %p178 = scmp.ne.s32.totalorder %s163, %s177
      %p179 = scmp.eq.s32.totalorder %s22, 0
      %p180 = por %p178, %p179
      %s181 = ssub.s32 %s16, %s23
      %p182 = scmp.eq.s32.totalorder %s181, 0
      %s184 = sadd.s32 %s183, 1
      %s185 = scalar_select %p182, %s183, %s184
      %p188 = pneg %p182
      %p189 = scmp.eq.s32.totalorder %s16, 1
      %p190 = por %p188, %p189
      %p191 = scmp.ne.s32.totalorder %s183, %s186
      %p192 = scmp.eq.s32.totalorder %s16, 0
      %p193 = por %p191, %p192
      %p194 = scmp.ne.s32.totalorder %s183, %s186
      %p195 = scmp.eq.s32.totalorder %s21, 1
      %p196 = por %p194, %p195
      %p197 = scmp.ne.s32.totalorder %s186, %s187
      %p198 = scmp.eq.s32.totalorder %s21, 0
      %p199 = por %p197, %p198
      %p200 = scmp.ne.s32.totalorder %s186, %s187
      %p201 = scmp.eq.s32.totalorder %s22, 1
      %p202 = por %p200, %p201
      %p204 = scmp.ne.s32.totalorder %s187, %s203
      %p205 = scmp.eq.s32.totalorder %s22, 0
      %p206 = por %p204, %p205
      %p207 = scmp.le.s32.totalorder 1, %s16
      %p208 = scmp.lt.s32.totalorder %s16, 3
      %p209 = pnand %p207, %p208
      %p210 = pneg %p209
      // Predicated region
      $region9: #{tpu_custom_call.1} parent=5 // pred_check
        _
      $region10: #{tpu_custom_call.1} parent=5 // pred_check_branch
        %212 = sbr.rel (%p209) target = $region12
      $region11: #{tpu_custom_call.1} parent=5 // pred_region
        %s213 = ssub.s32 %s16, 1
        // Predicated region
        $region13: #{tpu_custom_call.1} parent=11 // pred_check
          %p214 = pneg %p89
        $region14: #{tpu_custom_call.1} parent=11 // pred_check_branch
          %216 = sbr.rel (%p214) target = $region16
        $region15: #{tpu_custom_call.1} parent=11 // pred_region
          _
        $region16: #{tpu_custom_call.1} parent=11 // pred_fallthru
          _
        // Predicated region
        $region17: #{tpu_custom_call.1} parent=11 // pred_check
          %p217 = pneg %p110
        $region18: #{tpu_custom_call.1} parent=11 // pred_check_branch
          %219 = sbr.rel (%p217) target = $region20
        $region19: #{tpu_custom_call.1} parent=11 // pred_region
          _
        $region20: #{tpu_custom_call.1} parent=11 // pred_fallthru
          _
        // Predicated region
        $region21: #{tpu_custom_call.1} parent=11 // pred_check
          %p220 = pneg %p131
        $region22: #{tpu_custom_call.1} parent=11 // pred_check_branch
          %222 = sbr.rel (%p220) target = $region24
        $region23: #{tpu_custom_call.1} parent=11 // pred_region
          _
        $region24: #{tpu_custom_call.1} parent=11 // pred_fallthru
          _
        // Predicated region
        $region25: #{tpu_custom_call.1} parent=11 // pred_check
          %p223 = pneg %p152
        $region26: #{tpu_custom_call.1} parent=11 // pred_check_branch
          %225 = sbr.rel (%p223) target = $region28
        $region27: #{tpu_custom_call.1} parent=11 // pred_region
          _
        $region28: #{tpu_custom_call.1} parent=11 // pred_fallthru
          _
        // Predicated region
        $region29: #{tpu_custom_call.1} parent=11 // pred_check
          %p226 = pneg %p173
        $region30: #{tpu_custom_call.1} parent=11 // pred_check_branch
          %228 = sbr.rel (%p226) target = $region32
        $region31: #{tpu_custom_call.1} parent=11 // pred_region
          _
        $region32: #{tpu_custom_call.1} parent=11 // pred_fallthru
          _
      $region12: #{tpu_custom_call.1} parent=5 // pred_fallthru
        _
      %p229 = scmp.lt.s32.totalorder %s16, 2
      // Predicated region
      $region33: #{tpu_custom_call.1} parent=5 // pred_check
        %p230 = pneg %p229
      $region34: #{tpu_custom_call.1} parent=5 // pred_check_branch
        %232 = sbr.rel (%p230) target = $region36
      $region35: #{tpu_custom_call.1} parent=5 // pred_region
        // Predicated region
        $region37: #{tpu_custom_call.1} parent=35 // pred_check
          %p233 = pneg %p36
        $region38: #{tpu_custom_call.1} parent=35 // pred_check_branch
          %235 = sbr.rel (%p233) target = $region40
        $region39: #{tpu_custom_call.1} parent=35 // pred_region
          %p236 = scmp.lt.s32.totalorder %s16, 1
          %s237 = scalar_select %p236, %s16, 1
          %s238 = smul.addr %s237, 4
          %s239 = scalar_lea.vmem %s0, %s238
        $region40: #{tpu_custom_call.1} parent=35 // pred_fallthru
          _
        // Predicated region
        $region41: #{tpu_custom_call.1} parent=35 // pred_check
          %p240 = pneg %p62
        $region42: #{tpu_custom_call.1} parent=35 // pred_check_branch
          %242 = sbr.rel (%p240) target = $region44
        $region43: #{tpu_custom_call.1} parent=35 // pred_region
          %p243 = scmp.lt.s32.totalorder %s16, 1
          %s244 = scalar_select %p243, %s16, 1
          %s245 = smul.addr %s244, 8
          %s246 = scalar_lea.vmem %s1, %s245
        $region44: #{tpu_custom_call.1} parent=35 // pred_fallthru
          _
      $region36: #{tpu_custom_call.1} parent=5 // pred_fallthru
        _
      %p247 = scmp.le.s32.totalorder 1, %s16
      %p248 = scmp.lt.s32.totalorder %s16, 3
      %p249 = pnand %p247, %p248
      %p250 = pneg %p249
      // Predicated region
      $region45: #{tpu_custom_call.1} parent=5 // pred_check
        _
      $region46: #{tpu_custom_call.1} parent=5 // pred_check_branch
        %252 = sbr.rel (%p249) target = $region48
      $region47: #{tpu_custom_call.1} parent=5 // pred_region
        %s253 = ssub.s32 %s16, 1
        %p254 = scmp.lt.s32.totalorder %s21, 1
        %s255 = scalar_select %p254, %s21, 1
        %s256 = smul.addr %s255, 4
        %s257 = scalar_lea.vmem %s0, %s256
        %p258 = pneg %p42
        %p259 = pneg %p39
        %p260 = scmp.lt.s32.totalorder %s21, 1
        %s261 = scalar_select %p260, %s21, 1
        %s262 = smul.addr %s261, 8
        %s263 = scalar_lea.vmem %s1, %s262
        %p264 = pneg %p68
        %p265 = pneg %p65
        %p266 = pneg %p89
        %p267 = pneg %p86
        %p268 = pneg %p110
        %p269 = pneg %p107
        %p270 = pneg %p131
        %p271 = pneg %p128
        %p272 = pneg %p152
        %p273 = pneg %p149
        %p274 = pneg %p173
        %p275 = pneg %p170
        %p276 = pneg %p199
        %p277 = pneg %p196
        %s278 = sand.u32 %s186, 1
        %s279 = scalar_lea.sflag [#allocation3], %s278
        %s280 = sand.u32 %s186, 1
        %s281 = scalar_lea.vmem [#allocation2], %s280
        %p282 = scmp.lt.s32.totalorder %s21, 1
        %s283 = scalar_select %p282, %s21, 1
        %s284 = smul.addr %s283, 4
        %s285 = scalar_lea.vmem %s0, %s284
        %p286 = scmp.lt.s32.totalorder %s21, 1
        %s287 = scalar_select %p286, %s21, 1
        %s288 = smul.addr %s287, 8
        %s289 = scalar_lea.vmem %s1, %s288
        %v291 = vld [vmem:[%s285] sm:$0xf]
        %v292 = vld [vmem:[%s289] sm:$0xff]
        %v293 = vld [vmem:[%s2] sm:$0xf]
        %v294 = vld [vmem:[%s2 + $0x4] sm:$0xf]
        %v295 = vld [vmem:[%s2 + $0x8] sm:$0xf]
        %v296 = vld [vmem:[%s2 + $0xc] sm:$0xf]
        %v297 = vld [vmem:[%s2 + $0x10] sm:$0xf]
        %v298 = vld [vmem:[%s2 + $0x14] sm:$0xf]
        %v299 = vld [vmem:[%s2 + $0x18] sm:$0xf]
        %v300 = vld [vmem:[%s2 + $0x1c] sm:$0xf]
        %v301 = vld [vmem:[%s2 + $0x20] sm:$0xf]
        %v302 = vld [vmem:[%s2 + $0x24] sm:$0xf]
        %v303 = vld [vmem:[%s2 + $0x28] sm:$0xf]
        %v304 = vld [vmem:[%s2 + $0x2c] sm:$0xf]
        %v305 = vld [vmem:[%s2 + $0x30] sm:$0xf]
        %v306 = vld [vmem:[%s2 + $0x34] sm:$0xf]
        %v307 = vld [vmem:[%s2 + $0x38] sm:$0xf]
        %v308 = vld [vmem:[%s2 + $0x3c] sm:$0xf]
        %v309 = vld [vmem:[%s3] sm:$0x1]
        %v311 = vlaneseq
        %v312 = vshrl.u32 %v311, 7
        %v313 = vsub.s32 0, %v312
        %v314 = vrot.slane %v309, %v313
        %v332 = vunpack.c.l.b16 %v293
        %v333 = vunpack.c.l.b16 %v294
        %v334 = vunpack.c.l.b16 %v295
        %v335 = vunpack.c.l.b16 %v296
        %v336 = vunpack.c.l.b16 %v297
        %v337 = vunpack.c.l.b16 %v298
        %v338 = vunpack.c.l.b16 %v299
        %v339 = vunpack.c.l.b16 %v300
        %v340 = vunpack.c.l.b16 %v301
        %v341 = vunpack.c.l.b16 %v302
        %v342 = vunpack.c.l.b16 %v303
        %v343 = vunpack.c.l.b16 %v304
        %v344 = vunpack.c.l.b16 %v305
        %v345 = vunpack.c.l.b16 %v306
        %v346 = vunpack.c.l.b16 %v307
        %v347 = vunpack.c.l.b16 %v308
        %v348 = vpack.c.b16 %v333, %v332
        %v349 = vpack.c.b16 %v335, %v334
        %v350 = vpack.c.b16 %v337, %v336
        %v351 = vpack.c.b16 %v339, %v338
        %v352 = vpack.c.b16 %v341, %v340
        %v353 = vpack.c.b16 %v343, %v342
        %v354 = vpack.c.b16 %v345, %v344
        %v355 = vpack.c.b16 %v347, %v346
        %364 = vmatprep.subr.bf16.mxu0 0
        %365 = vmatpush1.bf16.msra.mxu0 %v348
        %366 = vmatprep.subr.bf16.mxu0 0
        %367 = vmatpush1.bf16.msra.mxu0 %v349
        %368 = vmatprep.subr.bf16.mxu0 0
        %369 = vmatpush1.bf16.msra.mxu0 %v350
        %370 = vmatprep.subr.bf16.mxu0 0
        %371 = vmatpush1.bf16.msra.mxu0 %v351
        %372 = vmatprep.subr.bf16.mxu0 0
        %373 = vmatpush1.bf16.msra.mxu0 %v352
        %374 = vmatprep.subr.bf16.mxu0 0
        %375 = vmatpush1.bf16.msra.mxu0 %v353
        %376 = vmatprep.subr.bf16.mxu0 0
        %377 = vmatpush1.bf16.msra.mxu0 %v354
        %378 = vmatprep.subr.bf16.mxu0 0
        %379 = vmatpush1.bf16.msra.mxu0 %v355
        %380 = vmatprep.subr.bf16.mxu0 0
        %381 = vmatpush1.bf16.msra.mxu0 0
        %382 = vmatprep.subr.bf16.mxu0 0
        %383 = vmatpush1.bf16.msra.mxu0 0
        %384 = vmatprep.subr.bf16.mxu0 0
        %385 = vmatpush1.bf16.msra.mxu0 0
        %386 = vmatprep.subr.bf16.mxu0 0
        %387 = vmatpush1.bf16.msra.mxu0 0
        %388 = vmatprep.subr.bf16.mxu0 0
        %389 = vmatpush1.bf16.msra.mxu0 0
        %390 = vmatprep.subr.bf16.mxu0 0
        %391 = vmatpush1.bf16.msra.mxu0 0
        %392 = vmatprep.subr.bf16.mxu0 0
        %393 = vmatpush1.bf16.msra.mxu0 0
        %394 = vmatprep.subr.bf16.mxu0 0
        %395 = vmatpush1.bf16.msra.mxu0 0
        %396 = vmatprep.mubr.bf16.mxu0 0
        %397 = vmatmul.mubr.bf16.gmra.mrb[0].mxu0 %v291
        %v398 = vpop.f32.mrb[0].mxu0
        %v399 = vadd.f32 %v314, %v398
        %v400 = vpop.f32.mrb[0].mxu0
        %v401 = vpop.f32.mrb[0].mxu0
        %v402 = vpop.f32.mrb[0].mxu0
        %403 = vdwg.mxu0
        %v404 = vtanh.pop %v399
        %v405 = vld [vmem:[%s5] sm:$0xf]
        %v406 = vld [vmem:[%s5 + $0x4] sm:$0xf]
        %v407 = vld [vmem:[%s5 + $0x8] sm:$0xf]
        %v408 = vld [vmem:[%s5 + $0xc] sm:$0xf]
        %v409 = vld [vmem:[%s5 + $0x10] sm:$0xf]
        %v410 = vld [vmem:[%s5 + $0x14] sm:$0xf]
        %v411 = vld [vmem:[%s5 + $0x18] sm:$0xf]
        %v412 = vld [vmem:[%s5 + $0x1c] sm:$0xf]
        %v413 = vld [vmem:[%s5 + $0x20] sm:$0xf]
        %v414 = vld [vmem:[%s5 + $0x24] sm:$0xf]
        %v415 = vld [vmem:[%s5 + $0x28] sm:$0xf]
        %v416 = vld [vmem:[%s5 + $0x2c] sm:$0xf]
        %v417 = vld [vmem:[%s5 + $0x30] sm:$0xf]
        %v418 = vld [vmem:[%s5 + $0x34] sm:$0xf]
        %v419 = vld [vmem:[%s5 + $0x38] sm:$0xf]
        %v420 = vld [vmem:[%s5 + $0x3c] sm:$0xf]
        %v437 = vunpack.c.l.b16 %v405
        %v438 = vunpack.c.l.b16 %v406
        %v439 = vunpack.c.l.b16 %v407
        %v440 = vunpack.c.l.b16 %v408
        %v441 = vunpack.c.l.b16 %v409
        %v442 = vunpack.c.l.b16 %v410
        %v443 = vunpack.c.l.b16 %v411
        %v444 = vunpack.c.l.b16 %v412
        %v445 = vunpack.c.l.b16 %v413
        %v446 = vunpack.c.l.b16 %v414
        %v447 = vunpack.c.l.b16 %v415
        %v448 = vunpack.c.l.b16 %v416
        %v449 = vunpack.c.l.b16 %v417
        %v450 = vunpack.c.l.b16 %v418
        %v451 = vunpack.c.l.b16 %v419
        %v452 = vunpack.c.l.b16 %v420
        %v453 = vpack.c.b16 %v438, %v437
        %v454 = vpack.c.b16 %v440, %v439
        %v455 = vpack.c.b16 %v442, %v441
        %v456 = vpack.c.b16 %v444, %v443
        %v457 = vpack.c.b16 %v446, %v445
        %v458 = vpack.c.b16 %v448, %v447
        %v459 = vpack.c.b16 %v450, %v449
        %v460 = vpack.c.b16 %v452, %v451
        %469 = vmatprep.subr.bf16.mxu0 0
        %470 = vmatpush1.bf16.msra.mxu0 %v453
        %471 = vmatprep.subr.bf16.mxu0 0
        %472 = vmatpush1.bf16.msra.mxu0 %v454
        %473 = vmatprep.subr.bf16.mxu0 0
        %474 = vmatpush1.bf16.msra.mxu0 %v455
        %475 = vmatprep.subr.bf16.mxu0 0
        %476 = vmatpush1.bf16.msra.mxu0 %v456
        %477 = vmatprep.subr.bf16.mxu0 0
        %478 = vmatpush1.bf16.msra.mxu0 %v457
        %479 = vmatprep.subr.bf16.mxu0 0
        %480 = vmatpush1.bf16.msra.mxu0 %v458
        %481 = vmatprep.subr.bf16.mxu0 0
        %482 = vmatpush1.bf16.msra.mxu0 %v459
        %483 = vmatprep.subr.bf16.mxu0 0
        %484 = vmatpush1.bf16.msra.mxu0 %v460
        %485 = vmatprep.subr.bf16.mxu0 0
        %486 = vmatpush1.bf16.msra.mxu0 0
        %487 = vmatprep.subr.bf16.mxu0 0
        %488 = vmatpush1.bf16.msra.mxu0 0
        %489 = vmatprep.subr.bf16.mxu0 0
        %490 = vmatpush1.bf16.msra.mxu0 0
        %491 = vmatprep.subr.bf16.mxu0 0
        %492 = vmatpush1.bf16.msra.mxu0 0
        %493 = vmatprep.subr.bf16.mxu0 0
        %494 = vmatpush1.bf16.msra.mxu0 0
        %495 = vmatprep.subr.bf16.mxu0 0
        %496 = vmatpush1.bf16.msra.mxu0 0
        %497 = vmatprep.subr.bf16.mxu0 0
        %498 = vmatpush1.bf16.msra.mxu0 0
        %499 = vmatprep.subr.bf16.mxu0 0
        %500 = vmatpush1.bf16.msra.mxu0 0
        %501 = vmatprep.mubr.bf16.mxu0 0
        %502 = vmatmul.mubr.bf16.gmra.mrb[0].mxu0 %v291
        %v503 = vpop.f32.mrb[0].mxu0
        %v504 = vadd.f32 0.0, %v503
        %v505 = vpop.f32.mrb[0].mxu0
        %v506 = vpop.f32.mrb[0].mxu0
        %v507 = vpop.f32.mrb[0].mxu0
        %508 = vdwg.mxu0
        %v509 = vld [vmem:[%s4] sm:$0xff]
        %v510 = vld [vmem:[%s4 + $0x8] sm:$0xff]
        %v511 = vld [vmem:[%s4 + $0x10] sm:$0xff]
        %v512 = vld [vmem:[%s4 + $0x18] sm:$0xff]
        %v513 = vld [vmem:[%s4 + $0x20] sm:$0xff]
        %v514 = vld [vmem:[%s4 + $0x28] sm:$0xff]
        %v515 = vld [vmem:[%s4 + $0x30] sm:$0xff]
        %v516 = vld [vmem:[%s4 + $0x38] sm:$0xff]
        %v517 = vld [vmem:[%s4 + $0x40] sm:$0xff]
        %v518 = vld [vmem:[%s4 + $0x48] sm:$0xff]
        %v519 = vld [vmem:[%s4 + $0x50] sm:$0xff]
        %v520 = vld [vmem:[%s4 + $0x58] sm:$0xff]
        %v521 = vld [vmem:[%s4 + $0x60] sm:$0xff]
        %v522 = vld [vmem:[%s4 + $0x68] sm:$0xff]
        %v523 = vld [vmem:[%s4 + $0x70] sm:$0xff]
        %v524 = vld [vmem:[%s4 + $0x78] sm:$0xff]
        %525 = vmatprep.subr.mxu0 0.0
        %526 = vmatpush1.msra.mxu0 %v509
        %527 = vmatprep.subr.mxu0 0.0
        %528 = vmatpush1.msra.mxu0 %v510
        %529 = vmatprep.subr.mxu0 0.0
        %530 = vmatpush1.msra.mxu0 %v511
        %531 = vmatprep.subr.mxu0 0.0
        %532 = vmatpush1.msra.mxu0 %v512
        %533 = vmatprep.subr.mxu0 0.0
        %534 = vmatpush1.msra.mxu0 %v513
        %535 = vmatprep.subr.mxu0 0.0
        %536 = vmatpush1.msra.mxu0 %v514
        %537 = vmatprep.subr.mxu0 0.0
        %538 = vmatpush1.msra.mxu0 %v515
        %539 = vmatprep.subr.mxu0 0.0
        %540 = vmatpush1.msra.mxu0 %v516
        %541 = vmatprep.subr.mxu0 0.0
        %542 = vmatpush1.msra.mxu0 %v517
        %543 = vmatprep.subr.mxu0 0.0
        %544 = vmatpush1.msra.mxu0 %v518
        %545 = vmatprep.subr.mxu0 0.0
        %546 = vmatpush1.msra.mxu0 %v519
        %547 = vmatprep.subr.mxu0 0.0
        %548 = vmatpush1.msra.mxu0 %v520
        %549 = vmatprep.subr.mxu0 0.0
        %550 = vmatpush1.msra.mxu0 %v521
        %551 = vmatprep.subr.mxu0 0.0
        %552 = vmatpush1.msra.mxu0 %v522
        %553 = vmatprep.subr.mxu0 0.0
        %554 = vmatpush1.msra.mxu0 %v523
        %555 = vmatprep.subr.mxu0 0.0
        %556 = vmatpush1.msra.mxu0 %v524
        %557 = vmatprep.subr.mxu0 0.0
        %558 = vmatpush1.msra.mxu0 0.0
        %559 = vmatprep.subr.mxu0 0.0
        %560 = vmatpush1.msra.mxu0 0.0
        %561 = vmatprep.subr.mxu0 0.0
        %562 = vmatpush1.msra.mxu0 0.0
        %563 = vmatprep.subr.mxu0 0.0
        %564 = vmatpush1.msra.mxu0 0.0
        %565 = vmatprep.subr.mxu0 0.0
        %566 = vmatpush1.msra.mxu0 0.0
        %567 = vmatprep.subr.mxu0 0.0
        %568 = vmatpush1.msra.mxu0 0.0
        %569 = vmatprep.subr.mxu0 0.0
        %570 = vmatpush1.msra.mxu0 0.0
        %571 = vmatprep.subr.mxu0 0.0
        %572 = vmatpush1.msra.mxu0 0.0
        %573 = vmatprep.subr.mxu0 0.0
        %574 = vmatpush1.msra.mxu0 0.0
        %575 = vmatprep.subr.mxu0 0.0
        %576 = vmatpush1.msra.mxu0 0.0
        %577 = vmatprep.subr.mxu0 0.0
        %578 = vmatpush1.msra.mxu0 0.0
        %579 = vmatprep.subr.mxu0 0.0
        %580 = vmatpush1.msra.mxu0 0.0
        %581 = vmatprep.subr.mxu0 0.0
        %582 = vmatpush1.msra.mxu0 0.0
        %583 = vmatprep.subr.mxu0 0.0
        %584 = vmatpush1.msra.mxu0 0.0
        %585 = vmatprep.subr.mxu0 0.0
        %586 = vmatpush1.msra.mxu0 0.0
        %587 = vmatprep.subr.mxu0 0.0
        %588 = vmatpush1.msra.mxu0 0.0
        %589 = vmatprep.mubr.f32.mxu0 0.0
        %590 = vmatmul.mubr.f32.gmra.mrb[0].mxu0 %v404
        %v591 = vpop.f32.mrb[0].mxu0
        %v592 = vadd.f32 0.0, %v591
        %v593 = vpop.f32.mrb[0].mxu0
        %594 = vdwg.mxu0
        %596 = vset.pattern.permute.xlu0 0
        %597 = vperm.xlu0 %596, %v292
        %v598 = vpop.permute.xlu0 %597
        %v600 = vmul.f32 %v592, %v598
        %vm601 = vcmask 31744
        %v602 = vsel %vm601, %v600, -inf
        %v603 = vrot.slane %v602, 4
        %v604 = vmax.f32 %v602, %v603
        %v605 = vrot.slane %v604, 2
        %v606 = vmax.f32 %v604, %v605
        %v607 = vrot.slane %v606, 1
        %v608 = vmax.f32 %v606, %v607
        %v609 = vsub.f32 %v600, %v608
        %v610 = vmul.f32 %v609, 1.442695
        %v611 = vpow.pop %v610
        %v612 = vmul.f32 %v611, %v598
        %v613 = vsel %vm601, %v612, 0.0
        %v614 = vrot.slane %v613, 4
        %v615 = vadd.f32 %v613, %v614
        %v616 = vrot.slane %v615, 2
        %v617 = vadd.f32 %v615, %v616
        %v618 = vrot.slane %v617, 1
        %v619 = vadd.f32 %v617, %v618
        %v620 = vadd.f32 %v619, 1e-13
        %v621 = vrcp.pop %v620
        %v622 = vmul.f32 %v612, %v621
        %v623 = vmul.f32 %v622, %v504
        %v624 = vsel %vm601, %v623, 0.0
        %v625 = vrot.slane %v624, 4
        %v626 = vadd.f32 %v624, %v625
        %v627 = vrot.slane %v626, 2
        %v628 = vadd.f32 %v626, %v627
        %v629 = vrot.slane %v628, 1
        %v630 = vadd.f32 %v628, %v629
        %v631 = vld [vmem:[%s6] sm:$0x1]
        %v632 = vadd.f32 %v630, %v631
        %vm633 = vcmask 24576
        %634 = vst.msk [vmem:[%s281] sm:$0x1] %vm633, %v632
        %s635 = sand.u32 %s186, 1
        %s636 = scalar_lea.sflag [#allocation3], %s635
        %s637 = sand.u32 %s186, 1
        %s638 = scalar_lea.vmem [#allocation2], %s637
        // Predicated region
        $region49: #{tpu_custom_call.1} parent=47 // pred_check
          %p639 = pneg %p196
        $region50: #{tpu_custom_call.1} parent=47 // pred_check_branch
          %641 = sbr.rel (%p639) target = $region52
        $region51: #{tpu_custom_call.1} parent=47 // pred_region
          %s643 = ssub.s32 16, 16
          %644 = vsyncadd %s636, %s643
          %s645 = smul.addr %s21, 16
          %s646 = scalar_lea.hbm %s7, %s645
          %s648 = sshll.u32 %s638, 4
          %s649 = int_to_ptr.vmem [resolvable:$true] %s648
          %651 = dma.vmem_to_hbm [thread:$0]  %s649, 16, %s646, %s636
        $region52: #{tpu_custom_call.1} parent=47 // pred_fallthru
          _
      $region48: #{tpu_custom_call.1} parent=5 // pred_fallthru
        _
      %p652 = scmp.le.s32.totalorder 2, %s16
      // Predicated region
      $region53: #{tpu_custom_call.1} parent=5 // pred_check
        %p653 = pneg %p652
      $region54: #{tpu_custom_call.1} parent=5 // pred_check_branch
        %655 = sbr.rel (%p653) target = $region56
      $region55: #{tpu_custom_call.1} parent=5 // pred_region
        %s656 = ssub.s32 %s16, 2
        // Predicated region
        $region57: #{tpu_custom_call.1} parent=55 // pred_check
          %p657 = pneg %p202
        $region58: #{tpu_custom_call.1} parent=55 // pred_check_branch
          %659 = sbr.rel (%p657) target = $region60
        $region59: #{tpu_custom_call.1} parent=55 // pred_region
          %s660 = sand.u32 %s187, 1
          %s661 = scalar_lea.sflag [#allocation3], %s660
          %s662 = sand.u32 %s187, 1
          %s663 = scalar_lea.vmem [#allocation2], %s662
          %664 = dma.done %s661, 16
        $region60: #{tpu_custom_call.1} parent=55 // pred_fallthru
          _
      $region56: #{tpu_custom_call.1} parent=5 // pred_fallthru
        _
    $region6: #{tpu_custom_call.1} parent=1 // loop_footer
      %s20 = sadd.s32 1, %s16
    $region7: #{tpu_custom_call.1} parent=1 // loop_footer_branch
      %15 = sbr.rel target = $region3
    $region8: #{tpu_custom_call.1} parent=1 // loop_exit
      _
    %665 = vsyncpa [#allocation3], 1
    %s666 = scalar_lea.sflag [#allocation3], 1
    %667 = vsyncpa %s666, 1

</llo_original>
